<compile_context>
chip_gen: v5e
topology: v5e:2x2
jax: 0.10.0
libtpu: 0.0.40
codegen_flags: <defaults>
</compile_context>

<pallas_src>
import functools

import jax
import jax.numpy as jnp
from jax.experimental import pallas as pl
from jax.experimental.pallas import tpu as pltpu

KEY_SEQ = 10       # key_sequence_size
HIDDEN = 256       # hidden width of get_memory_index MLP
MEM_ROWS = 10      # memory_size[0]
MEM_WIDTH = 66     # memory_size[1]


def _round_up(n, m):
    return ((n + m - 1) // m) * m


def memory_store_kernel(ind_ref, x_ref, mem_ref, w1_ref, b1_ref, w2_ref, b2_ref,
                        out_ref, *, mxu_dtype, hidden_dtype):
    # ---- get_memory_index MLP: Linear(10,256) -> ReLU -> Linear(256,10) ----
    ind = ind_ref[...].astype(mxu_dtype)
    w1 = w1_ref[...].astype(mxu_dtype)
    h = jnp.dot(ind, w1, preferred_element_type=jnp.float32) + b1_ref[...]
    # Keep the hidden activation narrow (bf16): it is the largest per-step
    # intermediate ([tm, 256]) and dominates vreg/VMEM spill pressure at large tm.
    h = jnp.maximum(h, 0.0).astype(hidden_dtype)
    logits = jnp.dot(h, w2_ref[...].astype(hidden_dtype),
                     preferred_element_type=jnp.float32) + b2_ref[...]      # [tm, R] f32

    # ---- argmax directly on logits (softmax is monotone => identical index) ----
    # First-max-wins tie-break, matching torch.argmax; compare stays in f32.
    b, r = logits.shape
    col = jax.lax.broadcasted_iota(jnp.int32, (b, r), 1)
    lmax = jnp.max(logits, axis=-1, keepdims=True)
    masked_col = jnp.where(logits == lmax, col, r)                          # [tm, R]
    first = jnp.min(masked_col, axis=-1, keepdims=True)                     # [tm, 1]
    onehot = (masked_col == first).astype(jnp.float32)                      # [tm, R]

    # ---- gather memory[indices] via one-hot matmul (TPU-friendly gather) ----
    mem_sel = jnp.dot(onehot, mem_ref[...],
                      preferred_element_type=jnp.float32)                   # [tm, M]

    # ---- readout(mem_sel, x) : elementwise multiply ----
    out_ref[...] = (mem_sel * x_ref[...]).astype(out_ref.dtype)


def memory_store_forward(indicator, x, memory, w1, b1, w2, b2,
                         *, block_b=4096, mxu_dtype=jnp.float32,
                         hidden_dtype=jnp.bfloat16, out_dtype=jnp.float32,
                         vmem_limit_bytes=48 * 1024 * 1024):
    """Pallas forward pass.  No wrapper-side padding / slicing (no extra HBM passes)."""
    B, K = indicator.shape
    R, M = memory.shape
    H = w1.shape[1]

    # Batch tile: multiple of 8 (sublane), capped by block_b.  The grid handles
    # the ragged batch tail; out-of-bounds rows of the edge block are computed
    # on garbage but never written back (output DMA is clipped to B).
    tm = min(_round_up(block_b, 8), _round_up(B, 8))
    grid = (pl.cdiv(B, tm),)

    batch_spec_k = pl.BlockSpec((tm, K), lambda i: (i, 0))      # indicator tile
    batch_spec_m = pl.BlockSpec((tm, M), lambda i: (i, 0))      # x / out tile

    def resident(shape):
        # Whole array, same block every grid step -> stays VMEM-resident.
        return pl.BlockSpec(shape, lambda i: (0, 0))

    return pl.pallas_call(
        functools.partial(memory_store_kernel, mxu_dtype=mxu_dtype,
                          hidden_dtype=hidden_dtype),
        out_shape=jax.ShapeDtypeStruct((B, M), out_dtype),
        grid=grid,
        in_specs=[
            batch_spec_k,          # indicator
            batch_spec_m,          # x
            resident((R, M)),      # memory
            resident((K, H)),      # w1
            resident((1, H)),      # b1
            resident((H, R)),      # w2
            resident((1, R)),      # b2
        ],
        out_specs=batch_spec_m,
        compiler_params=pltpu.CompilerParams(
            # Megacore sharding of the batch axis on v7x; no-op on v5e/v6e.
            # TODO(synk): verify in xprof that both v7x TCs engage; if not, switch
            #             this axis to pltpu.CORE_PARALLEL.
            dimension_semantics=("parallel",),
            vmem_limit_bytes=vmem_limit_bytes),
    )(indicator, x, memory, w1, b1, w2, b2)


def _reference(indicator, x, memory, w1, b1, w2, b2):
    h = jnp.maximum(indicator @ w1 + b1, 0.0)
    logits = h @ w2 + b2
    probs = jax.nn.softmax(logits, axis=1)
    idx = jnp.argmax(probs, axis=-1)
    return memory[idx] * x


if __name__ == "__main__":
    key = jax.random.PRNGKey(0)
    k_ind, k_x, k_mem, k_w1, k_b1, k_w2, k_b2 = jax.random.split(key, 7)

    B = 2
    indicator = jax.random.normal(k_ind, (B, KEY_SEQ), dtype=jnp.float32)
    x = jax.random.normal(k_x, (B, MEM_WIDTH), dtype=jnp.float32)

    # The PyTorch buffer `memory` is zero-initialized; use deterministic random
    # values here so the kernel output is non-trivial to check.
    memory = jax.random.normal(k_mem, (MEM_ROWS, MEM_WIDTH), dtype=jnp.float32)

    # get_memory_index parameters (Linear(10,256) -> ReLU -> Linear(256,10)).
    w1 = jax.random.normal(k_w1, (KEY_SEQ, HIDDEN), dtype=jnp.float32) * 0.1
    b1 = jax.random.normal(k_b1, (1, HIDDEN), dtype=jnp.float32) * 0.1
    w2 = jax.random.normal(k_w2, (HIDDEN, MEM_ROWS), dtype=jnp.float32) * 0.1
    b2 = jax.random.normal(k_b2, (1, MEM_ROWS), dtype=jnp.float32) * 0.1

    out = memory_store_forward(indicator, x, memory, w1, b1, w2, b2)
    out = jax.block_until_ready(out)

    ref = _reference(indicator, x, memory, w1, b1, w2, b2)
    assert out.shape == (B, MEM_WIDTH)
    assert jnp.allclose(out, ref, atol=1e-4, rtol=1e-4), "mismatch vs reference"

    print("KERNEL_OK")
</pallas_src>

<mosaic_0001>
module attributes {stable_mosaic.version = 11 : i64} {
  func.func @memory_store_kernel(%arg0: i32, %arg1: memref<8x10xf32, #tpu.memory_space<vmem>>, %arg2: memref<8x66xf32, #tpu.memory_space<vmem>>, %arg3: memref<10x66xf32, #tpu.memory_space<vmem>>, %arg4: memref<10x256xf32, #tpu.memory_space<vmem>>, %arg5: memref<1x256xf32, #tpu.memory_space<vmem>>, %arg6: memref<256x10xf32, #tpu.memory_space<vmem>>, %arg7: memref<1x10xf32, #tpu.memory_space<vmem>>, %arg8: memref<8x66xf32, #tpu.memory_space<vmem>>) attributes {dimension_semantics = [#tpu.dimension_semantics<parallel>], iteration_bounds = array<i64: 1>, scalar_prefetch = 0 : i64, scratch_operands = 0 : i64, tpu.core_type = #tpu.core_type<tc>, window_params = [{transform_indices = @transform_0, window_bounds = array<i64: 8, 10>}, {transform_indices = @transform_1, window_bounds = array<i64: 8, 66>}, {pipeline_mode = #tpu.pipeline_mode<synchronous>, transform_indices = @transform_2, window_bounds = array<i64: 10, 66>}, {pipeline_mode = #tpu.pipeline_mode<synchronous>, transform_indices = @transform_3, window_bounds = array<i64: 10, 256>}, {pipeline_mode = #tpu.pipeline_mode<synchronous>, transform_indices = @transform_4, window_bounds = array<i64: 1, 256>}, {pipeline_mode = #tpu.pipeline_mode<synchronous>, transform_indices = @transform_5, window_bounds = array<i64: 256, 10>}, {pipeline_mode = #tpu.pipeline_mode<synchronous>, transform_indices = @transform_6, window_bounds = array<i64: 1, 10>}, {transform_indices = @transform_7, window_bounds = array<i64: 8, 66>}]} {
    %c0 = arith.constant 0 : index
    %c0_0 = arith.constant 0 : index
    %0 = vector.load %arg1[%c0, %c0_0] : memref<8x10xf32, #tpu.memory_space<vmem>>, vector<8x10xf32>
    %c0_1 = arith.constant 0 : index
    %c0_2 = arith.constant 0 : index
    %1 = vector.load %arg4[%c0_1, %c0_2] : memref<10x256xf32, #tpu.memory_space<vmem>>, vector<10x256xf32>
    %cst = arith.constant dense<0.000000e+00> : vector<8x256xf32>
    %2 = tpu.matmul %0, %1, %cst {dimension_numbers = #tpu.dot_dimension_numbers<[1], [0], [0], [1], [0, 0, 1, 1], [], []>} : vector<8x10xf32>, vector<10x256xf32>, vector<8x256xf32> -> vector<8x256xf32>
    %c0_3 = arith.constant 0 : index
    %c0_4 = arith.constant 0 : index
    %3 = vector.load %arg5[%c0_3, %c0_4] : memref<1x256xf32, #tpu.memory_space<vmem>>, vector<1x256xf32>
    %4 = vector.broadcast %3 : vector<1x256xf32> to vector<8x256xf32>
    %5 = arith.addf %2, %4 : vector<8x256xf32>
    %cst_5 = arith.constant 0.000000e+00 : f32
    %6 = vector.broadcast %cst_5 : f32 to vector<8x256xf32>
    %7 = arith.maximumf %5, %6 : vector<8x256xf32>
    %8 = arith.truncf %7 : vector<8x256xf32> to vector<8x256xbf16>
    %c0_6 = arith.constant 0 : index
    %c0_7 = arith.constant 0 : index
    %9 = vector.load %arg6[%c0_6, %c0_7] : memref<256x10xf32, #tpu.memory_space<vmem>>, vector<256x10xf32>
    %10 = arith.truncf %9 : vector<256x10xf32> to vector<256x10xbf16>
    %cst_8 = arith.constant dense<0.000000e+00> : vector<8x10xf32>
    %11 = tpu.matmul %8, %10, %cst_8 {dimension_numbers = #tpu.dot_dimension_numbers<[1], [0], [0], [1], [0, 0, 1, 1], [], []>} : vector<8x256xbf16>, vector<256x10xbf16>, vector<8x10xf32> -> vector<8x10xf32>
    %c0_9 = arith.constant 0 : index
    %c0_10 = arith.constant 0 : index
    %12 = vector.load %arg7[%c0_9, %c0_10] : memref<1x10xf32, #tpu.memory_space<vmem>>, vector<1x10xf32>
    %13 = vector.broadcast %12 : vector<1x10xf32> to vector<8x10xf32>
    %14 = arith.addf %11, %13 : vector<8x10xf32>
    %15 = tpu.iota {dimensions = array<i32: 1>} : vector<8x10xi32>
    %cst_11 = arith.constant dense<0xFF800000> : vector<8xf32>
    %16 = vector.multi_reduction <maximumf>, %14, %cst_11 [1] : vector<8x10xf32> to vector<8xf32>
    %17 = vector.shape_cast %16 : vector<8xf32> to vector<8x1xf32>
    %18 = vector.broadcast %17 : vector<8x1xf32> to vector<8x10xf32>
    %19 = arith.cmpf oeq, %14, %18 : vector<8x10xf32>
    %c10_i32 = arith.constant 10 : i32
    %20 = vector.broadcast %c10_i32 : i32 to vector<8x10xi32>
    %21 = arith.select %19, %15, %20 : vector<8x10xi1>, vector<8x10xi32>
    %cst_12 = arith.constant dense<2147483647> : vector<8xi32>
    %22 = vector.multi_reduction <minsi>, %21, %cst_12 [1] : vector<8x10xi32> to vector<8xi32>
    %23 = vector.shape_cast %22 : vector<8xi32> to vector<8x1xi32>
    %24 = vector.broadcast %23 : vector<8x1xi32> to vector<8x10xi32>
    %25 = arith.cmpi eq, %21, %24 : vector<8x10xi32>
    %26 = arith.extui %25 : vector<8x10xi1> to vector<8x10xi32>
    %27 = arith.sitofp %26 : vector<8x10xi32> to vector<8x10xf32>
    %c0_13 = arith.constant 0 : index
    %c0_14 = arith.constant 0 : index
    %28 = vector.load %arg3[%c0_13, %c0_14] : memref<10x66xf32, #tpu.memory_space<vmem>>, vector<10x66xf32>
    %cst_15 = arith.constant dense<0.000000e+00> : vector<8x66xf32>
    %29 = tpu.matmul %27, %28, %cst_15 {dimension_numbers = #tpu.dot_dimension_numbers<[1], [0], [0], [1], [0, 0, 1, 1], [], []>} : vector<8x10xf32>, vector<10x66xf32>, vector<8x66xf32> -> vector<8x66xf32>
    %c0_16 = arith.constant 0 : index
    %c0_17 = arith.constant 0 : index
    %30 = vector.load %arg2[%c0_16, %c0_17] : memref<8x66xf32, #tpu.memory_space<vmem>>, vector<8x66xf32>
    %31 = arith.mulf %29, %30 : vector<8x66xf32>
    %c0_18 = arith.constant 0 : index
    %c0_19 = arith.constant 0 : index
    %32 = vector.load %arg8[%c0_18, %c0_19] : memref<8x66xf32, #tpu.memory_space<vmem>>, vector<8x66xf32>
    tpu.vector_store %arg8[%c0_18, %c0_19], %31 {strides = array<i32>} : memref<8x66xf32, #tpu.memory_space<vmem>>, vector<8x66xf32>,
    return
  }
  func.func @transform_0(%arg0: i32) -> (i32, i32) {
    %c0_i32 = arith.constant 0 : i32
    %c0_i32_0 = arith.constant 0 : i32
    return %arg0, %c0_i32 : i32, i32
  }
  func.func @transform_1(%arg0: i32) -> (i32, i32) {
    %c0_i32 = arith.constant 0 : i32
    %c0_i32_0 = arith.constant 0 : i32
    return %arg0, %c0_i32 : i32, i32
  }
  func.func @transform_2(%arg0: i32) -> (i32, i32) {
    %c0_i32 = arith.constant 0 : i32
    %c0_i32_0 = arith.constant 0 : i32
    %c0_i32_1 = arith.constant 0 : i32
    return %c0_i32, %c0_i32_0 : i32, i32
  }
  func.func @transform_3(%arg0: i32) -> (i32, i32) {
    %c0_i32 = arith.constant 0 : i32
    %c0_i32_0 = arith.constant 0 : i32
    %c0_i32_1 = arith.constant 0 : i32
    return %c0_i32, %c0_i32_0 : i32, i32
  }
  func.func @transform_4(%arg0: i32) -> (i32, i32) {
    %c0_i32 = arith.constant 0 : i32
    %c0_i32_0 = arith.constant 0 : i32
    %c0_i32_1 = arith.constant 0 : i32
    return %c0_i32, %c0_i32_0 : i32, i32
  }
  func.func @transform_5(%arg0: i32) -> (i32, i32) {
    %c0_i32 = arith.constant 0 : i32
    %c0_i32_0 = arith.constant 0 : i32
    %c0_i32_1 = arith.constant 0 : i32
    return %c0_i32, %c0_i32_0 : i32, i32
  }
  func.func @transform_6(%arg0: i32) -> (i32, i32) {
    %c0_i32 = arith.constant 0 : i32
    %c0_i32_0 = arith.constant 0 : i32
    %c0_i32_1 = arith.constant 0 : i32
    return %c0_i32, %c0_i32_0 : i32, i32
  }
  func.func @transform_7(%arg0: i32) -> (i32, i32) {
    %c0_i32 = arith.constant 0 : i32
    %c0_i32_0 = arith.constant 0 : i32
    return %arg0, %c0_i32 : i32, i32
  }
}

</mosaic_0001>

<llo_original>
// kernel: tpu_custom_call.1
$region0: #{tpu_custom_call.1}
  #allocation0 [shape = 'u32[]', space=smem, size = 0x4, offset = 0x4, fixed_abs, tag = 'smem constant byte address 0x4 - core index']
  #allocation1 [shape = 'u32[72,128]{1,0:T(1,128)}', space=vmem, size = 0x9000, scoped, tag = 'internal scratch']
  %s0 = inlined_call_operand.vmem [shape: f32[2,10], index: 0, kind: input, shape index: {}]
  %s1 = inlined_call_operand.vmem [shape: f32[2,66], index: 1, kind: input, shape index: {}]
  %s2 = inlined_call_operand.vmem [shape: f32[10,66], index: 2, kind: input, shape index: {}]
  %s3 = inlined_call_operand.vmem [shape: f32[10,256], index: 3, kind: input, shape index: {}]
  %s4 = inlined_call_operand.vmem [shape: f32[1,256], index: 4, kind: input, shape index: {}]
  %s5 = inlined_call_operand.vmem [shape: f32[256,10], index: 5, kind: input, shape index: {}]
  %s6 = inlined_call_operand.vmem [shape: f32[1,10], index: 6, kind: input, shape index: {}]
  %s7 = inlined_call_operand.hbm [shape: f32[2,66], index: 7, kind: output, shape index: {}]
  %s8 = sld [smem:[#allocation0]]
  $region38: #{tpu_custom_call.1} parent=0
    _
  %s10 = ssub.s32 1, %s8
  %s11 = scalar_select 0, %s10, %s8
  $region1: #{tpu_custom_call.1} parent=0
    #allocation2 [shape = 'u8[4096]{0}', space=vmem, size = 0x1000, scoped, tag = 'output window, operand 0, single buffered']
    #allocation3 [shape = 's32[1]{0}', space=sflag, size = 0x4, scoped, tag = 'scoped memory for tpu_custom_call.1']
    %12 = vsyncpa [#allocation3], 0
    // Predicated region
    $region2: #{tpu_custom_call.1} parent=1 // pred_check
      _
    $region3: #{tpu_custom_call.1} parent=1 // pred_check_branch
      %14 = sbr.rel (0) target = $region5
    $region4: #{tpu_custom_call.1} parent=1 // pred_region
      _
    $region5: #{tpu_custom_call.1} parent=1 // pred_fallthru
      _
    // Predicated region
    $region6: #{tpu_custom_call.1} parent=1 // pred_check
      _
    $region7: #{tpu_custom_call.1} parent=1 // pred_check_branch
      %16 = sbr.rel (0) target = $region9
    $region8: #{tpu_custom_call.1} parent=1 // pred_region
      _
    $region9: #{tpu_custom_call.1} parent=1 // pred_fallthru
      _
    // Predicated region
    $region10: #{tpu_custom_call.1} parent=1 // pred_check
      _
    $region11: #{tpu_custom_call.1} parent=1 // pred_check_branch
      %18 = sbr.rel (0) target = $region13
    $region12: #{tpu_custom_call.1} parent=1 // pred_region
      _
    $region13: #{tpu_custom_call.1} parent=1 // pred_fallthru
      _
    // Predicated region
    $region14: #{tpu_custom_call.1} parent=1 // pred_check
      _
    $region15: #{tpu_custom_call.1} parent=1 // pred_check_branch
      %20 = sbr.rel (0) target = $region17
    $region16: #{tpu_custom_call.1} parent=1 // pred_region
      _
    $region17: #{tpu_custom_call.1} parent=1 // pred_fallthru
      _
    // Predicated region
    $region18: #{tpu_custom_call.1} parent=1 // pred_check
      _
    $region19: #{tpu_custom_call.1} parent=1 // pred_check_branch
      %22 = sbr.rel (0) target = $region21
    $region20: #{tpu_custom_call.1} parent=1 // pred_region
      _
    $region21: #{tpu_custom_call.1} parent=1 // pred_fallthru
      _
    // Predicated region
    $region22: #{tpu_custom_call.1} parent=1 // pred_check
      _
    $region23: #{tpu_custom_call.1} parent=1 // pred_check_branch
      %24 = sbr.rel (0) target = $region25
    $region24: #{tpu_custom_call.1} parent=1 // pred_region
      _
    $region25: #{tpu_custom_call.1} parent=1 // pred_fallthru
      _
    // Predicated region
    $region26: #{tpu_custom_call.1} parent=1 // pred_check
      _
    $region27: #{tpu_custom_call.1} parent=1 // pred_check_branch
      %26 = sbr.rel (0) target = $region29
    $region28: #{tpu_custom_call.1} parent=1 // pred_region
      _
    $region29: #{tpu_custom_call.1} parent=1 // pred_fallthru
      _
    %v27 = vld [vmem:[%s0] sm:$0xff]
    %v28 = vld [vmem:[%s3] sm:$0xff]
    %v29 = vld [vmem:[%s3 + $0x8] sm:$0xff]
    %v30 = vld [vmem:[%s3 + $0x10] sm:$0x3]
    %v31 = vld [vmem:[%s3 + $0x18] sm:$0x3]
    %v32 = vld [vmem:[%s4] sm:$0x3]
    %v34 = vperm.slane %v32, 0
    %v35 = vperm.slane %v32, 1
    %vm38 = vcmask 80896
    %v40 = vsel %vm38, %v27, 0
    %vm42 = vcmask 1041408
    %v44 = vsel %vm42, %v30, 0
    %v47 = vsel %vm42, %v31, 0
    %49 = vmatpush.msra.mxu0 0.0
    %50 = vmatpush.msra.mxu0 0.0
    %51 = vmatpush.msra.mxu0 0.0
    %52 = vmatpush.msra.mxu0 0.0
    %53 = vmatpush.msra.mxu0 0.0
    %54 = vmatpush.msra.mxu0 0.0
    %55 = vmatpush.msra.mxu0 0.0
    %56 = vmatpush.msra.mxu0 0.0
    %57 = vmatpush.msra.mxu0 0.0
    %58 = vmatpush.msra.mxu0 0.0
    %59 = vmatpush.msra.mxu0 0.0
    %60 = vmatpush.msra.mxu0 0.0
    %61 = vmatpush.msra.mxu0 0.0
    %62 = vmatpush.msra.mxu0 0.0
    %63 = vmatpush.msra.mxu0 %v44
    %64 = vmatpush.msra.mxu0 %v28
    %65 = vmatmul.f32.gmra.mxu0 %v40
    %v66 = vpop.f32.mrf.mxu0
    %v67 = vadd.f32 %v34, %v66
    %68 = vdwg.mxu0
    %69 = vmatpush.msra.mxu0 0.0
    %70 = vmatpush.msra.mxu0 0.0
    %71 = vmatpush.msra.mxu0 0.0
    %72 = vmatpush.msra.mxu0 0.0
    %73 = vmatpush.msra.mxu0 0.0
    %74 = vmatpush.msra.mxu0 0.0
    %75 = vmatpush.msra.mxu0 0.0
    %76 = vmatpush.msra.mxu0 0.0
    %77 = vmatpush.msra.mxu0 0.0
    %78 = vmatpush.msra.mxu0 0.0
    %79 = vmatpush.msra.mxu0 0.0
    %80 = vmatpush.msra.mxu0 0.0
    %81 = vmatpush.msra.mxu0 0.0
    %82 = vmatpush.msra.mxu0 0.0
    %83 = vmatpush.msra.mxu0 %v47
    %84 = vmatpush.msra.mxu0 %v29
    %85 = vmatmul.f32.gmra.mxu0 %v40
    %v86 = vpop.f32.mrf.mxu0
    %v87 = vadd.f32 %v35, %v86
    %88 = vdwg.mxu0
    %v89 = vmax.f32 %v67, 0.0
    %v90 = vmax.f32 %v87, 0.0
    %v91 = vpack.c.bf16 %v89, %v89
    %v92 = vpack.c.bf16 %v90, %v90
    %v93 = vld [vmem:[%s5] sm:$0xff]
    %v94 = vld [vmem:[%s5 + $0x8] sm:$0xff]
    %v95 = vld [vmem:[%s5 + $0x10] sm:$0xff]
    %v96 = vld [vmem:[%s5 + $0x18] sm:$0xff]
    %v97 = vld [vmem:[%s5 + $0x20] sm:$0xff]
    %v98 = vld [vmem:[%s5 + $0x28] sm:$0xff]
    %v99 = vld [vmem:[%s5 + $0x30] sm:$0xff]
    %v100 = vld [vmem:[%s5 + $0x38] sm:$0xff]
    %v101 = vld [vmem:[%s5 + $0x40] sm:$0xff]
    %v102 = vld [vmem:[%s5 + $0x48] sm:$0xff]
    %v103 = vld [vmem:[%s5 + $0x50] sm:$0xff]
    %v104 = vld [vmem:[%s5 + $0x58] sm:$0xff]
    %v105 = vld [vmem:[%s5 + $0x60] sm:$0xff]
    %v106 = vld [vmem:[%s5 + $0x68] sm:$0xff]
    %v107 = vld [vmem:[%s5 + $0x70] sm:$0xff]
    %v108 = vld [vmem:[%s5 + $0x78] sm:$0xff]
    %v109 = vld [vmem:[%s5 + $0x80] sm:$0xff]
    %v110 = vld [vmem:[%s5 + $0x88] sm:$0xff]
    %v111 = vld [vmem:[%s5 + $0x90] sm:$0xff]
    %v112 = vld [vmem:[%s5 + $0x98] sm:$0xff]
    %v113 = vld [vmem:[%s5 + $0xa0] sm:$0xff]
    %v114 = vld [vmem:[%s5 + $0xa8] sm:$0xff]
    %v115 = vld [vmem:[%s5 + $0xb0] sm:$0xff]
    %v116 = vld [vmem:[%s5 + $0xb8] sm:$0xff]
    %v117 = vld [vmem:[%s5 + $0xc0] sm:$0xff]
    %v118 = vld [vmem:[%s5 + $0xc8] sm:$0xff]
    %v119 = vld [vmem:[%s5 + $0xd0] sm:$0xff]
    %v120 = vld [vmem:[%s5 + $0xd8] sm:$0xff]
    %v121 = vld [vmem:[%s5 + $0xe0] sm:$0xff]
    %v122 = vld [vmem:[%s5 + $0xe8] sm:$0xff]
    %v123 = vld [vmem:[%s5 + $0xf0] sm:$0xff]
    %v124 = vld [vmem:[%s5 + $0xf8] sm:$0xff]
    %v125 = vpack.c.bf16 %v94, %v93
    %v126 = vpack.c.bf16 %v96, %v95
    %v127 = vpack.c.bf16 %v98, %v97
    %v128 = vpack.c.bf16 %v100, %v99
    %v129 = vpack.c.bf16 %v102, %v101
    %v130 = vpack.c.bf16 %v104, %v103
    %v131 = vpack.c.bf16 %v106, %v105
    %v132 = vpack.c.bf16 %v108, %v107
    %v133 = vpack.c.bf16 %v110, %v109
    %v134 = vpack.c.bf16 %v112, %v111
    %v135 = vpack.c.bf16 %v114, %v113
    %v136 = vpack.c.bf16 %v116, %v115
    %v137 = vpack.c.bf16 %v118, %v117
    %v138 = vpack.c.bf16 %v120, %v119
    %v139 = vpack.c.bf16 %v122, %v121
    %v140 = vpack.c.bf16 %v124, %v123
    %v141 = vld [vmem:[%s6] sm:$0x1]
    %v143 = vperm.slane %v141, 0
    %145 = vmatpush.bf16.msra.mxu0 %v132
    %146 = vmatpush.bf16.msra.mxu0 %v131
    %147 = vmatpush.bf16.msra.mxu0 %v130
    %148 = vmatpush.bf16.msra.mxu0 %v129
    %149 = vmatpush.bf16.msra.mxu0 %v128
    %150 = vmatpush.bf16.msra.mxu0 %v127
    %151 = vmatpush.bf16.msra.mxu0 %v126
    %152 = vmatpush.bf16.msra.mxu0 %v125
    %153 = vmatmul.bf16.gmra.mxu0 %v91
    %v154 = vpop.f32.mrf.mxu0
    %v155 = vadd.f32 %v143, %v154
    %v156 = vpop.f32.mrf.mxu0
    %157 = vdwg.mxu0
    %158 = vmatpush.bf16.msra.mxu0 %v140
    %159 = vmatpush.bf16.msra.mxu0 %v139
    %160 = vmatpush.bf16.msra.mxu0 %v138
    %161 = vmatpush.bf16.msra.mxu0 %v137
    %162 = vmatpush.bf16.msra.mxu0 %v136
    %163 = vmatpush.bf16.msra.mxu0 %v135
    %164 = vmatpush.bf16.msra.mxu0 %v134
    %165 = vmatpush.bf16.msra.mxu0 %v133
    %166 = vmatmul.bf16.gmra.mxu0 %v92
    %v167 = vpop.f32.mrf.mxu0
    %v168 = vadd.f32 %v155, %v167
    %v169 = vpop.f32.mrf.mxu0
    %170 = vdwg.mxu0
    %v171 = vlaneseq
    %v172 = vand.u32 %v171, 127
    %v173 = vsel %vm38, %v168, -inf
    %174 = vmax.xlane.f32.xlu0 %v173
    %v175 = vpop.xlane.xlu0 %174
    %vm176 = vcmp.eq.f32.partialorder %v168, %v175
    %v177 = vsel %vm176, %v172, 10
    %v178 = vsel %vm38, %v177, 2147483647
    %v179 = vand.u32 %v178, 65535
    %v180 = vshra.s32 %v178, 16
    %v181 = vcvt.s32.f32 %v179
    %v182 = vcvt.s32.f32 %v180
    %183 = vmin.xlane.f32.xlu0 %v182
    %v184 = vpop.xlane.xlu0 %183
    %vm185 = vcmp.eq.f32.partialorder %v182, %v184
    %v186 = vsel %vm185, %v181, inf
    %187 = vmin.xlane.f32.xlu0 %v186
    %v188 = vpop.xlane.xlu0 %187
    %v189 = vcvt.f32.s32 %v188
    %v190 = vcvt.f32.s32 %v184
    %v191 = vshll.u32 %v190, 16
    %v192 = vadd.s32 %v191, %v189
    %vm193 = vcmp.eq.s32.totalorder %v177, %v192
    %v194 = vsel %vm193, 1, 0
    %v195 = vcvt.s32.f32 %v194
    %v196 = vld [vmem:[%s2] sm:$0xff]
    %v197 = vld [vmem:[%s2 + $0x8] sm:$0x3]
    %v199 = vsel %vm38, %v195, 0
    %v202 = vsel %vm42, %v197, 0
    %204 = vmatpush.msra.mxu0 0.0
    %205 = vmatpush.msra.mxu0 0.0
    %206 = vmatpush.msra.mxu0 0.0
    %207 = vmatpush.msra.mxu0 0.0
    %208 = vmatpush.msra.mxu0 0.0
    %209 = vmatpush.msra.mxu0 0.0
    %210 = vmatpush.msra.mxu0 0.0
    %211 = vmatpush.msra.mxu0 0.0
    %212 = vmatpush.msra.mxu0 0.0
    %213 = vmatpush.msra.mxu0 0.0
    %214 = vmatpush.msra.mxu0 0.0
    %215 = vmatpush.msra.mxu0 0.0
    %216 = vmatpush.msra.mxu0 0.0
    %217 = vmatpush.msra.mxu0 0.0
    %218 = vmatpush.msra.mxu0 %v202
    %219 = vmatpush.msra.mxu0 %v196
    %220 = vmatmul.f32.gmra.mxu0 %v199
    %v221 = vpop.f32.mrf.mxu0
    %v222 = vadd.f32 0.0, %v221
    %223 = vdwg.mxu0
    %v224 = vld [vmem:[%s1] sm:$0xff]
    %v225 = vmul.f32 %v222, %v224
    %vm226 = vcmask 539648
    %227 = vst.msk [vmem:[#allocation2] sm:$0xff] %vm226, %v225
    // Predicated region
    $region30: #{tpu_custom_call.1} parent=1 // pred_check
      _
    $region31: #{tpu_custom_call.1} parent=1 // pred_check_branch
      %229 = sbr.rel (0) target = $region33
    $region32: #{tpu_custom_call.1} parent=1 // pred_region
      %231 = vsyncadd [#allocation3], 96
      %s232 = sshll.u32 [#allocation2], 4
      %s233 = int_to_ptr.vmem [resolvable:$true] %s232
      %s234 = sshll.u32 %s7, 4
      %s235 = int_to_ptr.hbm [resolvable:$true] %s234
      %240 = dma.vmem_to_hbm [thread:$0]  %s233, 32, %s235, [#allocation3], 32, 32, 2
    $region33: #{tpu_custom_call.1} parent=1 // pred_fallthru
      _
    // Predicated region
    $region34: #{tpu_custom_call.1} parent=1 // pred_check
      _
    $region35: #{tpu_custom_call.1} parent=1 // pred_check_branch
      %242 = sbr.rel (0) target = $region37
    $region36: #{tpu_custom_call.1} parent=1 // pred_region
      %244 = dma.done [#allocation3], 128
    $region37: #{tpu_custom_call.1} parent=1 // pred_fallthru
      _
    %245 = vsyncpa [#allocation3], 1

</llo_original>
